<compile_context>
chip_gen: v6e
topology: v6e:2x2x1
jax: 0.10.0
libtpu: 0.0.40
codegen_flags: <defaults>
</compile_context>

<pallas_src>
import jax
import jax.numpy as jnp
from jax.experimental import pallas as pl
from jax.experimental.pallas import tpu as pltpu


# ----------------------------------------------------------------------------
# helpers
# ----------------------------------------------------------------------------
def _round_up(a: int, b: int) -> int:
    return (a + b - 1) // b * b


def _cdiv(a: int, b: int) -> int:
    return -(-a // b)


def _physical_vmem_bytes() -> int:
    """Per-TensorCore VMEM; conservative v7x default if the query fails."""
    try:
        return int(pltpu.get_tpu_info().vmem_capacity_bytes)
    except Exception:
        return 64 << 20


def _pick_tile(dim: int, align: int, max_tile: int) -> int:
    """Aligned tile <= max(max_tile, align) that overshoots `dim` by at most
    one alignment unit per tile (bounds padding waste)."""
    dim_a = _round_up(dim, align)
    max_tile = max(align, _round_up(max_tile, align))
    if dim_a <= max_tile:
        return dim_a
    num = _cdiv(dim_a, max_tile)
    return _round_up(_cdiv(dim_a, num), align)


def _maybe_pad(a, pads):
    if any(lo or hi for lo, hi in pads):
        return jnp.pad(a, pads)
    return a


# ----------------------------------------------------------------------------
# kernels
# ----------------------------------------------------------------------------
def _ensemble_linear_kernel_single_k(x_ref, w_ref, b_ref, o_ref):
    # x_ref: (tn, Din), w_ref: (Din, td), b_ref: (1, td), o_ref: (tn, td)
    # Whole reduction in one MXU pass; bias added in f32; no scratch, no pl.when.
    acc = jnp.dot(x_ref[...], w_ref[...], preferred_element_type=jnp.float32)
    o_ref[...] = (acc + b_ref[...].astype(jnp.float32)).astype(o_ref.dtype)


def _ensemble_linear_kernel_tiled_k(x_ref, w_ref, b_ref, o_ref, acc_ref):
    # Fallback for very large Din: K-tiled reduction with an f32 accumulator.
    # x_ref: (tn, tk), w_ref: (tk, td), b_ref: (1, td), o_ref: (tn, td)
    k = pl.program_id(3)

    @pl.when(k == 0)
    def _init():
        # Fold the bias add into the accumulator init (no extra VPU pass).
        acc_ref[...] = jnp.broadcast_to(
            b_ref[...].astype(jnp.float32), acc_ref.shape)

    acc_ref[...] += jnp.dot(x_ref[...], w_ref[...],
                            preferred_element_type=jnp.float32)

    @pl.when(k == pl.num_programs(3) - 1)
    def _finalize():
        o_ref[...] = acc_ref[...].astype(o_ref.dtype)


# ----------------------------------------------------------------------------
# wrapper
# ----------------------------------------------------------------------------
def ensemble_linear(x: jax.Array, weight: jax.Array, bias: jax.Array, *,
                    block_n: int | None = None, block_d: int | None = None,
                    block_k: int = 1024, use_bf16_matmul: bool = False,
                    force_k_tiling: bool = False) -> jax.Array:
    """Pallas implementation of EnsembleLinear.forward. Returns (E, N, Dout)."""
    num_ensemble, input_dim, output_dim = weight.shape
    assert bias.shape == (num_ensemble, 1, output_dim)

    shared_x = (x.ndim == 2)
    if shared_x:
        n, din_x = x.shape
    else:
        assert x.ndim == 3, f"unsupported x.ndim={x.ndim}"
        assert x.shape[0] == num_ensemble
        n, din_x = x.shape[1], x.shape[2]
    assert din_x == input_dim

    out_dtype = x.dtype

    # ---- generation-aware sizing (v7x: 64 MiB VMEM; v5e/v6e: 128 MiB).
    phys_vmem = _physical_vmem_bytes()
    big_vmem = phys_vmem >= (96 << 20)
    if block_n is None:
        block_n = 512 if big_vmem else 256
    if block_d is None:
        block_d = 512 if big_vmem else 256

    x_is = 2 if use_bf16_matmul else jnp.dtype(x.dtype).itemsize
    w_is = 2 if use_bf16_matmul else jnp.dtype(weight.dtype).itemsize
    b_is = jnp.dtype(bias.dtype).itemsize
    o_is = jnp.dtype(out_dtype).itemsize

    # ---- tile sizes: (8,128)-aligned, lane-dense output, minimal overshoot.
    n_align = 16 if use_bf16_matmul else 8   # bf16 packs 2 rows per sublane
    tn = _pick_tile(n, n_align, block_n)
    nn = _cdiv(n, tn)
    n_pad = tn * nn
    td = _pick_tile(output_dim, 128, block_d)
    nd = _cdiv(output_dim, td)
    d_pad = td * nd

    # ---- K strategy: keep the whole reduction in one block whenever the
    #      double-buffered working set fits VMEM (no accumulator round-trip,
    #      no redundant weight re-streaming).
    single_k_step_bytes = 2 * (tn * input_dim * x_is + input_dim * td * w_is
                               + td * b_is + tn * td * o_is)
    use_single_k = (not force_k_tiling) and (
        single_k_step_bytes <= int(phys_vmem * 0.55))

    if use_single_k:
        tk, nk, k_pad = input_dim, 1, input_dim   # full-dim block: no K padding
    else:
        tk = _pick_tile(input_dim, 128, block_k)
        nk = _cdiv(input_dim, tk)
        k_pad = tk * nk

    # ---- zero-pad to tile multiples (zeros in K contribute nothing; padded
    #      N rows / Dout cols are sliced away at the end).  Weight/bias pads
    #      and the bf16 cast should be cached by the caller across calls.
    if shared_x:
        x_p = _maybe_pad(x, [(0, n_pad - n), (0, k_pad - input_dim)])
    else:
        x_p = _maybe_pad(x, [(0, 0), (0, n_pad - n), (0, k_pad - input_dim)])
    w_p = _maybe_pad(weight, [(0, 0), (0, k_pad - input_dim),
                              (0, d_pad - output_dim)])
    b_p = _maybe_pad(bias, [(0, 0), (0, 0), (0, d_pad - output_dim)])
    if use_bf16_matmul:
        x_p = x_p.astype(jnp.bfloat16)
        w_p = w_p.astype(jnp.bfloat16)

    # ---- grid ordering: stream the smaller operand redundantly.
    x_pass_bytes = num_ensemble * n_pad * k_pad * x_is   # one full pass over x
    w_total_bytes = num_ensemble * k_pad * d_pad * w_is
    weight_resident = (nd - 1) * x_pass_bytes <= (nn - 1) * w_total_bytes

    if use_single_k:
        if weight_resident:
            # grid (E, Dout-tiles, N-tiles): weight panel resident across N.
            grid = (num_ensemble, nd, nn)
            if shared_x:
                x_spec = pl.BlockSpec((tn, tk), lambda e, j, i: (i, 0))
            else:
                x_spec = pl.BlockSpec((None, tn, tk), lambda e, j, i: (e, i, 0))
            w_spec = pl.BlockSpec((None, tk, td), lambda e, j, i: (e, 0, j))
            b_spec = pl.BlockSpec((None, 1, td), lambda e, j, i: (e, 0, j))
            o_spec = pl.BlockSpec((None, tn, td), lambda e, j, i: (e, i, j))
        else:
            # grid (E, N-tiles, Dout-tiles): x row-panel resident across Dout.
            grid = (num_ensemble, nn, nd)
            if shared_x:
                x_spec = pl.BlockSpec((tn, tk), lambda e, i, j: (i, 0))
            else:
                x_spec = pl.BlockSpec((None, tn, tk), lambda e, i, j: (e, i, 0))
            w_spec = pl.BlockSpec((None, tk, td), lambda e, i, j: (e, 0, j))
            b_spec = pl.BlockSpec((None, 1, td), lambda e, i, j: (e, 0, j))
            o_spec = pl.BlockSpec((None, tn, td), lambda e, i, j: (e, i, j))
        kernel = _ensemble_linear_kernel_single_k
        scratch = []
        dims = ("parallel", "parallel", "parallel")
        bytes_per_step = single_k_step_bytes
    else:
        # K-tiled fallback (huge Din). Ordering is traffic-neutral here; if the
        # weight DMA is exposed, deepen its pipeline (pl.Buffered(3)) or move
        # to an in-kernel K loop over a resident weight slab.
        grid = (num_ensemble, nd, nn, nk)
        if shared_x:
            x_spec = pl.BlockSpec((tn, tk), lambda e, j, i, k: (i, k))
        else:
            x_spec = pl.BlockSpec((None, tn, tk), lambda e, j, i, k: (e, i, k))
        w_spec = pl.BlockSpec((None, tk, td), lambda e, j, i, k: (e, k, j))
        b_spec = pl.BlockSpec((None, 1, td), lambda e, j, i, k: (e, 0, j))
        o_spec = pl.BlockSpec((None, tn, td), lambda e, j, i, k: (e, i, j))
        kernel = _ensemble_linear_kernel_tiled_k
        scratch = [pltpu.VMEM((tn, td), jnp.float32)]
        dims = ("parallel", "parallel", "parallel", "arbitrary")
        bytes_per_step = (2 * (tn * tk * x_is + tk * td * w_is + td * b_is
                               + tn * td * o_is) + tn * td * 4)

    # ---- truthful cost estimate (streamed traffic, not logical sizes).
    if use_single_k:
        x_reads = nd if weight_resident else 1
        w_reads = 1 if weight_resident else nn
    else:
        x_reads, w_reads = nd, nn
    cost = pl.CostEstimate(
        flops=2 * num_ensemble * n_pad * k_pad * d_pad,
        transcendentals=0,
        bytes_accessed=int(x_reads * num_ensemble * n_pad * k_pad * x_is
                           + w_reads * num_ensemble * k_pad * d_pad * w_is
                           + num_ensemble * d_pad * b_is
                           + num_ensemble * n_pad * d_pad * o_is),
    )

    # ---- VMEM limit: working set + headroom, clamped to ~3/4 of physical
    #      VMEM (~48 MiB on v7x, ~96 MiB on v5e/v6e; load-bearing on v5e whose
    #      default scoped limit is only 16 MiB).
    vmem_cap = (phys_vmem * 3) // 4
    vmem_limit = min(max(bytes_per_step + (8 << 20), 32 << 20), vmem_cap)
    vmem_limit = max(vmem_limit, bytes_per_step + (2 << 20))

    out_padded = pl.pallas_call(
        kernel,
        out_shape=jax.ShapeDtypeStruct((num_ensemble, n_pad, d_pad), out_dtype),
        grid_spec=pltpu.PrefetchScalarGridSpec(
            num_scalar_prefetch=0,
            grid=grid,
            in_specs=[x_spec, w_spec, b_spec],
            out_specs=o_spec,
            scratch_shapes=scratch,
        ),
        compiler_params=pltpu.CompilerParams(
            dimension_semantics=dims,
            vmem_limit_bytes=int(vmem_limit),
        ),
        cost_estimate=cost,
    )(x_p, w_p, b_p)

    if n_pad == n and d_pad == output_dim:
        return out_padded
    return out_padded[:, :n, :output_dim]


def init_ensemble_linear_params(key, input_dim, output_dim, num_ensemble,
                                dtype=jnp.float32):
    """Matches the PyTorch module init: weight ~ trunc_normal
    (std = 1/(2*sqrt(input_dim)), cutoffs [-2, 2]); bias = zeros((E, 1, Dout))."""
    std = 1.0 / (2.0 * input_dim ** 0.5)
    lo, hi = -2.0 / std, 2.0 / std
    weight = std * jax.random.truncated_normal(
        key, lo, hi, (num_ensemble, input_dim, output_dim), dtype=dtype)
    bias = jnp.zeros((num_ensemble, 1, output_dim), dtype=dtype)
    return weight, bias


# TODO(synk): load_save / update_save / get_decay_loss are host-side parameter
# management (not part of forward) and are intentionally not kernelized.

if __name__ == "__main__":
    key = jax.random.PRNGKey(0)
    kw, kb, kx2, kx3, kw2, kb2, kx4 = jax.random.split(key, 7)

    # --- primary shapes (module-consistent, small) ---------------------------
    num_ensemble, input_dim, output_dim, batch = 4, 32, 32, 8
    weight, _zero_bias = init_ensemble_linear_params(
        kw, input_dim, output_dim, num_ensemble)
    # Non-zero bias so the bias add is actually tested.
    bias = 0.5 * jax.random.normal(
        kb, (num_ensemble, 1, output_dim), dtype=jnp.float32)

    # Case 1: 2-D input shared across the ensemble (f32, single-K fast path).
    x2 = jax.random.normal(kx2, (batch, input_dim), dtype=jnp.float32)
    out2 = jax.block_until_ready(ensemble_linear(x2, weight, bias))
    ref2 = jnp.einsum('ij,bjk->bik', x2, weight) + bias
    assert out2.shape == (num_ensemble, batch, output_dim)
    assert jnp.allclose(out2, ref2, atol=1e-5, rtol=1e-5)

    # Case 2: 3-D per-ensemble input (f32, single-K fast path).
    x3 = jax.random.normal(kx3, (num_ensemble, batch, input_dim),
                           dtype=jnp.float32)
    out3 = jax.block_until_ready(ensemble_linear(x3, weight, bias))
    ref3 = jnp.einsum('bij,bjk->bik', x3, weight) + bias
    assert out3.shape == (num_ensemble, batch, output_dim)
    assert jnp.allclose(out3, ref3, atol=1e-5, rtol=1e-5)

    # Case 3: bf16 MXU inputs, f32 accumulation (loose tolerance).
    out3_bf16 = jax.block_until_ready(
        ensemble_linear(x3, weight, bias, use_bf16_matmul=True))
    assert out3_bf16.shape == (num_ensemble, batch, output_dim)
    assert jnp.allclose(out3_bf16, ref3, atol=2e-2, rtol=2e-2)

    # Case 4: ragged dims (tests padding + slicing + tight tiling).
    e_r, din_r, dout_r, n_r = 3, 48, 72, 20
    w_r, _ = init_ensemble_linear_params(kw2, din_r, dout_r, e_r)
    b_r = 0.3 * jax.random.normal(kb2, (e_r, 1, dout_r), dtype=jnp.float32)
    x_r = jax.random.normal(kx4, (e_r, n_r, din_r), dtype=jnp.float32)
    out_r = jax.block_until_ready(ensemble_linear(x_r, w_r, b_r))
    ref_r = jnp.einsum('bij,bjk->bik', x_r, w_r) + b_r
    assert out_r.shape == (e_r, n_r, dout_r)
    assert jnp.allclose(out_r, ref_r, atol=1e-4, rtol=1e-4)

    # Case 5: forced K-tiled fallback path (accumulator kernel).
    e_k, din_k, dout_k, n_k = 2, 160, 72, 20
    w_k, _ = init_ensemble_linear_params(kw2, din_k, dout_k, e_k)
    b_k = 0.3 * jax.random.normal(kb2, (e_k, 1, dout_k), dtype=jnp.float32)
    x_k = jax.random.normal(kx4, (e_k, n_k, din_k), dtype=jnp.float32)
    out_k = jax.block_until_ready(
        ensemble_linear(x_k, w_k, b_k, block_k=128, force_k_tiling=True))
    ref_k = jnp.einsum('bij,bjk->bik', x_k, w_k) + b_k
    assert out_k.shape == (e_k, n_k, dout_k)
    assert jnp.allclose(out_k, ref_k, atol=1e-4, rtol=1e-4)

    print("KERNEL_OK")
</pallas_src>

<mosaic_0001>
module attributes {stable_mosaic.version = 11 : i64} {
  func.func @_ensemble_linear_kernel_single_k(%arg0: i32, %arg1: i32, %arg2: i32, %arg3: memref<8x32xf32, #tpu.memory_space<vmem>>, %arg4: memref<1x32x128xf32, #tpu.memory_space<vmem>>, %arg5: memref<1x1x128xf32, #tpu.memory_space<vmem>>, %arg6: memref<1x8x128xf32, #tpu.memory_space<vmem>>) attributes {dimension_semantics = [#tpu.dimension_semantics<parallel>, #tpu.dimension_semantics<parallel>, #tpu.dimension_semantics<parallel>], iteration_bounds = array<i64: 4, 1, 1>, scalar_prefetch = 0 : i64, scratch_operands = 0 : i64, tpu.core_type = #tpu.core_type<tc>, window_params = [{transform_indices = @transform_0, window_bounds = array<i64: 8, 32>}, {transform_indices = @transform_1, window_bounds = array<i64: 1, 32, 128>}, {transform_indices = @transform_2, window_bounds = array<i64: 1, 1, 128>}, {transform_indices = @transform_3, window_bounds = array<i64: 1, 8, 128>}]} {
    %c0 = arith.constant 0 : index
    %c0_0 = arith.constant 0 : index
    %0 = vector.load %arg3[%c0, %c0_0] : memref<8x32xf32, #tpu.memory_space<vmem>>, vector<8x32xf32>
    %c0_1 = arith.constant 0 : index
    %c0_2 = arith.constant 0 : index
    %c0_3 = arith.constant 0 : index
    %1 = vector.load %arg4[%c0_1, %c0_2, %c0_3] : memref<1x32x128xf32, #tpu.memory_space<vmem>>, vector<1x32x128xf32>
    %2 = vector.shape_cast %1 : vector<1x32x128xf32> to vector<32x128xf32>
    %cst = arith.constant dense<0.000000e+00> : vector<8x128xf32>
    %3 = tpu.matmul %0, %2, %cst {dimension_numbers = #tpu.dot_dimension_numbers<[1], [0], [0], [1], [0, 0, 1, 1], [], []>} : vector<8x32xf32>, vector<32x128xf32>, vector<8x128xf32> -> vector<8x128xf32>
    %c0_4 = arith.constant 0 : index
    %c0_5 = arith.constant 0 : index
    %c0_6 = arith.constant 0 : index
    %4 = vector.load %arg5[%c0_4, %c0_5, %c0_6] : memref<1x1x128xf32, #tpu.memory_space<vmem>>, vector<1x1x128xf32>
    %5 = vector.shape_cast %4 : vector<1x1x128xf32> to vector<1x128xf32>
    %6 = vector.broadcast %5 : vector<1x128xf32> to vector<8x128xf32>
    %7 = arith.addf %3, %6 : vector<8x128xf32>
    %c0_7 = arith.constant 0 : index
    %c0_8 = arith.constant 0 : index
    %c0_9 = arith.constant 0 : index
    %8 = vector.load %arg6[%c0_7, %c0_8, %c0_9] : memref<1x8x128xf32, #tpu.memory_space<vmem>>, vector<1x8x128xf32>
    %9 = vector.shape_cast %8 : vector<1x8x128xf32> to vector<8x128xf32>
    %10 = vector.shape_cast %7 : vector<8x128xf32> to vector<1x8x128xf32>
    tpu.vector_store %arg6[%c0_7, %c0_8, %c0_9], %10 {strides = array<i32>} : memref<1x8x128xf32, #tpu.memory_space<vmem>>, vector<1x8x128xf32>,
    return
  }
  func.func @transform_0(%arg0: i32, %arg1: i32, %arg2: i32) -> (i32, i32) {
    %c0_i32 = arith.constant 0 : i32
    %c0_i32_0 = arith.constant 0 : i32
    return %arg2, %c0_i32 : i32, i32
  }
  func.func @transform_1(%arg0: i32, %arg1: i32, %arg2: i32) -> (i32, i32, i32) {
    %c0_i32 = arith.constant 0 : i32
    %c0_i32_0 = arith.constant 0 : i32
    return %arg0, %c0_i32, %arg1 : i32, i32, i32
  }
  func.func @transform_2(%arg0: i32, %arg1: i32, %arg2: i32) -> (i32, i32, i32) {
    %c0_i32 = arith.constant 0 : i32
    %c0_i32_0 = arith.constant 0 : i32
    return %arg0, %c0_i32, %arg1 : i32, i32, i32
  }
  func.func @transform_3(%arg0: i32, %arg1: i32, %arg2: i32) -> (i32, i32, i32) {
    %c0_i32 = arith.constant 0 : i32
    return %arg0, %arg2, %arg1 : i32, i32, i32
  }
}

</mosaic_0001>

<llo_original>
// kernel: tpu_custom_call.1
$region0: #{tpu_custom_call.1}
  #allocation0 [shape = 'u32[]', space=smem, size = 0x4, offset = 0x4, fixed_abs, tag = 'smem constant byte address 0x4 - core index']
  #allocation1 [shape = 'u32[144,128]{1,0:T(1,128)}', space=vmem, size = 0x12000, scoped, tag = 'internal scratch']
  %s0 = inlined_call_operand.hbm [shape: f32[8,32], index: 0, kind: input, shape index: {}]
  %s1 = inlined_call_operand.hbm [shape: f32[4,32,128], index: 1, kind: input, shape index: {}]
  %s2 = inlined_call_operand.hbm [shape: f32[4,1,128], index: 2, kind: input, shape index: {}]
  %s3 = inlined_call_operand.hbm [shape: f32[4,8,128], index: 3, kind: output, shape index: {}]
  %s4 = sld [smem:[#allocation0]]
  $region57: #{tpu_custom_call.1} parent=0
    _
  %s6 = ssub.s32 1, %s4
  %s7 = scalar_select 0, %s6, %s4
  $region1: #{tpu_custom_call.1} parent=0
    #allocation2 [shape = 'u8[4096]{0}', space=vmem, size = 0x1000, scoped, tag = 'input window, operand 0, single buffered']
    #allocation3 [shape = 's32[2]{0}', space=sflag, size = 0x8, scoped, tag = 'scoped memory for tpu_custom_call.1']
    #allocation4 [shape = 's32[2]{0}', space=sflag, size = 0x8, scoped, tag = 'scoped memory for tpu_custom_call.1']
    #allocation5 [shape = 'u8[32768]{0}', space=vmem, size = 0x8000, scoped, tag = 'input window, operand 1']
    #allocation6 [shape = 's32[2]{0}', space=sflag, size = 0x8, scoped, tag = 'scoped memory for tpu_custom_call.1']
    #allocation7 [shape = 'u8[1024]{0}', space=vmem, size = 0x400, scoped, tag = 'input window, operand 2']
    #allocation8 [shape = 'u8[8192]{0}', space=vmem, size = 0x2000, scoped, tag = 'output window, operand 0']
    %8 = vsyncpa [#allocation3], 0
    %9 = vsyncpa [#allocation6], 0
    %s10 = scalar_lea.sflag [#allocation6], 1
    %11 = vsyncpa %s10, 0
    %12 = vsyncpa [#allocation4], 0
    %s13 = scalar_lea.sflag [#allocation4], 1
    %14 = vsyncpa %s13, 0
    loop: start=0, step=1, limit=6
    $region2: #{tpu_custom_call.1} parent=1 // loop_pre_header
      _
    $region3: #{tpu_custom_call.1} parent=1 // loop_header
      %s16 = sphi 0, %s20
      %p17 = scmp.ge.s32.totalorder %s16, 6
      %s23 = sphi 0, %s42
      %s24 = sphi 0, %s38
      %s25 = sphi 0, %s34
      %s26 = sphi 0, %s23
      %s27 = sphi 0, %s24
      %s28 = sphi 0, %s25
      %s29 = sphi 0, %s26
      %s30 = sphi 0, %s27
      %s31 = sphi 0, %s28
      %s45 = sphi 0, %s47
      %s48 = sphi 0, %s45
      %s49 = sphi 0, %s48
      %s65 = sphi 0, %s49
      %s73 = sphi 0, %s75
      %s76 = sphi 0, %s73
      %s77 = sphi 0, %s76
      %s93 = sphi 0, %s77
      %s101 = sphi 0, %s103
      %s104 = sphi 0, %s101
      %s105 = sphi 0, %s104
      %s121 = sphi 0, %s105
      %s131 = sphi 0, %s133
      %s134 = sphi 0, %s131
      %s135 = sphi 0, %s134
      %s151 = sphi 0, %s135
    $region4: #{tpu_custom_call.1} parent=1 // loop_header_branch
      %19 = sbr.rel (%p17) target = $region8
    $region5: #{tpu_custom_call.1} parent=1 // loop_body
      %s21 = ssub.s32 %s16, 1
      %s22 = ssub.s32 %s16, 2
      %s32 = sadd.s32 1, %s25
      %p33 = scmp.ge.s32.totalorder %s32, 1
      %s34 = scalar_select %p33, 0, %s32
      %s35 = sadd.s32 1, %s24
      %s36 = scalar_select %p33, %s35, %s24
      %p37 = scmp.ge.s32.totalorder %s36, 1
      %s38 = scalar_select %p37, 0, %s36
      %s39 = sadd.s32 1, %s23
      %s40 = scalar_select %p37, %s39, %s23
      %p41 = scmp.ge.s32.totalorder %s40, 4
      %s42 = scalar_select %p41, 0, %s40
      %s43 = ssub.s32 %s25, %s34
      %p44 = scmp.eq.s32.totalorder %s43, 0
      %s46 = sadd.s32 %s45, 1
      %s47 = scalar_select %p44, %s45, %s46
      %p50 = pneg %p44
      %p51 = scmp.eq.s32.totalorder %s16, 3
      %p52 = por %p50, %p51
      %p53 = scmp.ne.s32.totalorder %s45, %s48
      %p54 = scmp.eq.s32.totalorder %s16, 0
      %p55 = por %p53, %p54
      %p56 = scmp.ne.s32.totalorder %s45, %s48
      %p57 = scmp.eq.s32.totalorder %s21, 3
      %p58 = por %p56, %p57
      %p59 = scmp.ne.s32.totalorder %s48, %s49
      %p60 = scmp.eq.s32.totalorder %s21, 0
      %p61 = por %p59, %p60
      %p62 = scmp.ne.s32.totalorder %s48, %s49
      %p63 = scmp.eq.s32.totalorder %s22, 3
      %p64 = por %p62, %p63
      %p66 = scmp.ne.s32.totalorder %s49, %s65
      %p67 = scmp.eq.s32.totalorder %s22, 0
      %p68 = por %p66, %p67
      %s69 = ssub.s32 %s23, %s42
      %s70 = ssub.s32 %s24, %s38
      %s71 = sor.u32 %s69, %s70
      %p72 = scmp.eq.s32.totalorder %s71, 0
      %s74 = sadd.s32 %s73, 1
      %s75 = scalar_select %p72, %s73, %s74
      %p78 = pneg %p72
      %p79 = scmp.eq.s32.totalorder %s16, 3
      %p80 = por %p78, %p79
      %p81 = scmp.ne.s32.totalorder %s73, %s76
      %p82 = scmp.eq.s32.totalorder %s16, 0
      %p83 = por %p81, %p82
      %p84 = scmp.ne.s32.totalorder %s73, %s76
      %p85 = scmp.eq.s32.totalorder %s21, 3
      %p86 = por %p84, %p85
      %p87 = scmp.ne.s32.totalorder %s76, %s77
      %p88 = scmp.eq.s32.totalorder %s21, 0
      %p89 = por %p87, %p88
      %p90 = scmp.ne.s32.totalorder %s76, %s77
      %p91 = scmp.eq.s32.totalorder %s22, 3
      %p92 = por %p90, %p91
      %p94 = scmp.ne.s32.totalorder %s77, %s93
      %p95 = scmp.eq.s32.totalorder %s22, 0
      %p96 = por %p94, %p95
      %s97 = ssub.s32 %s23, %s42
      %s98 = ssub.s32 %s24, %s38
      %s99 = sor.u32 %s97, %s98
      %p100 = scmp.eq.s32.totalorder %s99, 0
      %s102 = sadd.s32 %s101, 1
      %s103 = scalar_select %p100, %s101, %s102
      %p106 = pneg %p100
      %p107 = scmp.eq.s32.totalorder %s16, 3
      %p108 = por %p106, %p107
      %p109 = scmp.ne.s32.totalorder %s101, %s104
      %p110 = scmp.eq.s32.totalorder %s16, 0
      %p111 = por %p109, %p110
      %p112 = scmp.ne.s32.totalorder %s101, %s104
      %p113 = scmp.eq.s32.totalorder %s21, 3
      %p114 = por %p112, %p113
      %p115 = scmp.ne.s32.totalorder %s104, %s105
      %p116 = scmp.eq.s32.totalorder %s21, 0
      %p117 = por %p115, %p116
      %p118 = scmp.ne.s32.totalorder %s104, %s105
      %p119 = scmp.eq.s32.totalorder %s22, 3
      %p120 = por %p118, %p119
      %p122 = scmp.ne.s32.totalorder %s105, %s121
      %p123 = scmp.eq.s32.totalorder %s22, 0
      %p124 = por %p122, %p123
      %s125 = ssub.s32 %s23, %s42
      %s126 = ssub.s32 %s25, %s34
      %s127 = sor.u32 %s125, %s126
      %s128 = ssub.s32 %s24, %s38
      %s129 = sor.u32 %s127, %s128
      %p130 = scmp.eq.s32.totalorder %s129, 0
      %s132 = sadd.s32 %s131, 1
      %s133 = scalar_select %p130, %s131, %s132
      %p136 = pneg %p130
      %p137 = scmp.eq.s32.totalorder %s16, 3
      %p138 = por %p136, %p137
      %p139 = scmp.ne.s32.totalorder %s131, %s134
      %p140 = scmp.eq.s32.totalorder %s16, 0
      %p141 = por %p139, %p140
      %p142 = scmp.ne.s32.totalorder %s131, %s134
      %p143 = scmp.eq.s32.totalorder %s21, 3
      %p144 = por %p142, %p143
      %p145 = scmp.ne.s32.totalorder %s134, %s135
      %p146 = scmp.eq.s32.totalorder %s21, 0
      %p147 = por %p145, %p146
      %p148 = scmp.ne.s32.totalorder %s134, %s135
      %p149 = scmp.eq.s32.totalorder %s22, 3
      %p150 = por %p148, %p149
      %p152 = scmp.ne.s32.totalorder %s135, %s151
      %p153 = scmp.eq.s32.totalorder %s22, 0
      %p154 = por %p152, %p153
      %p155 = scmp.le.s32.totalorder 1, %s16
      %p156 = scmp.lt.s32.totalorder %s16, 5
      %p157 = pnand %p155, %p156
      %p158 = pneg %p157
      // Predicated region
      $region9: #{tpu_custom_call.1} parent=5 // pred_check
        _
      $region10: #{tpu_custom_call.1} parent=5 // pred_check_branch
        %160 = sbr.rel (%p157) target = $region12
      $region11: #{tpu_custom_call.1} parent=5 // pred_region
        %s161 = ssub.s32 %s16, 1
        // Predicated region
        $region13: #{tpu_custom_call.1} parent=11 // pred_check
          %p162 = pneg %p61
        $region14: #{tpu_custom_call.1} parent=11 // pred_check_branch
          %164 = sbr.rel (%p162) target = $region16
        $region15: #{tpu_custom_call.1} parent=11 // pred_region
          %s166 = ssub.s32 128, 128
          %167 = vsyncadd [#allocation3], %s166
          %s168 = smul.addr %s28, 128
          %s169 = scalar_lea.hbm %s0, %s168
          %s171 = sshll.u32 [#allocation2], 4
          %s172 = int_to_ptr.vmem [resolvable:$true] %s171
          %174 = dma.hbm_to_vmem [thread:$0]  %s169, 128, %s172, [#allocation3]
        $region16: #{tpu_custom_call.1} parent=11 // pred_fallthru
          _
      $region12: #{tpu_custom_call.1} parent=5 // pred_fallthru
        _
      %p175 = scmp.lt.s32.totalorder %s16, 4
      // Predicated region
      $region17: #{tpu_custom_call.1} parent=5 // pred_check
        %p176 = pneg %p175
      $region18: #{tpu_custom_call.1} parent=5 // pred_check_branch
        %178 = sbr.rel (%p176) target = $region20
      $region19: #{tpu_custom_call.1} parent=5 // pred_region
        // Predicated region
        $region21: #{tpu_custom_call.1} parent=19 // pred_check
          %p179 = pneg %p83
        $region22: #{tpu_custom_call.1} parent=19 // pred_check_branch
          %181 = sbr.rel (%p179) target = $region24
        $region23: #{tpu_custom_call.1} parent=19 // pred_region
          %s182 = sand.u32 %s16, 1
          %s183 = scalar_lea.sflag [#allocation6], %s182
          %s184 = sand.u32 %s73, 1
          %s185 = smul.addr %s184, 32
          %s186 = scalar_lea.vmem [#allocation5], %s185
          %s188 = ssub.s32 512, 512
          %189 = vsyncadd %s183, %s188
          %s190 = smul.addr %s23, 4
          %s191 = sadd.s32 %s24, %s190
          %s192 = smul.addr %s191, 128
          %s193 = scalar_lea.hbm %s1, %s192
          %s194 = sshll.u32 %s186, 4
          %s195 = int_to_ptr.vmem [resolvable:$true] %s194
          %200 = dma.hbm_to_vmem [thread:$0]  %s193, 512, %s195, %s183, 128, 128, 8
        $region24: #{tpu_custom_call.1} parent=19 // pred_fallthru
          _
        // Predicated region
        $region25: #{tpu_custom_call.1} parent=19 // pred_check
          %p201 = pneg %p111
        $region26: #{tpu_custom_call.1} parent=19 // pred_check_branch
          %203 = sbr.rel (%p201) target = $region28
        $region27: #{tpu_custom_call.1} parent=19 // pred_region
          %s204 = sand.u32 %s16, 1
          %s205 = scalar_lea.sflag [#allocation6], %s204
          %s206 = sand.u32 %s101, 1
          %s207 = scalar_lea.vmem [#allocation7], %s206
          %s209 = ssub.s32 16, 16
          %210 = vsyncadd %s205, %s209
          %s211 = sadd.s32 %s24, %s23
          %s212 = smul.addr %s211, 16
          %s213 = scalar_lea.hbm %s2, %s212
          %s215 = sshll.u32 %s207, 4
          %s216 = int_to_ptr.vmem [resolvable:$true] %s215
          %218 = dma.hbm_to_vmem [thread:$0]  %s213, 16, %s216, %s205
        $region28: #{tpu_custom_call.1} parent=19 // pred_fallthru
          _
      $region20: #{tpu_custom_call.1} parent=5 // pred_fallthru
        _
      %p219 = scmp.le.s32.totalorder 1, %s16
      %p220 = scmp.lt.s32.totalorder %s16, 5
      %p221 = pnand %p219, %p220
      %p222 = pneg %p221
      // Predicated region
      $region29: #{tpu_custom_call.1} parent=5 // pred_check
        _
      $region30: #{tpu_custom_call.1} parent=5 // pred_check_branch
        %224 = sbr.rel (%p221) target = $region32
      $region31: #{tpu_custom_call.1} parent=5 // pred_region
        %s225 = ssub.s32 %s16, 1
        // Predicated region
        $region33: #{tpu_custom_call.1} parent=31 // pred_check
          %p226 = pneg %p61
        $region34: #{tpu_custom_call.1} parent=31 // pred_check_branch
          %228 = sbr.rel (%p226) target = $region36
        $region35: #{tpu_custom_call.1} parent=31 // pred_region
          %229 = dma.done [#allocation3], 128
        $region36: #{tpu_custom_call.1} parent=31 // pred_fallthru
          _
        %s230 = sand.u32 %s21, 1
        %s231 = scalar_lea.sflag [#allocation6], %s230
        %s232 = sand.u32 %s76, 1
        %s233 = smul.addr %s232, 32
        %s234 = scalar_lea.vmem [#allocation5], %s233
        // Predicated region
        $region37: #{tpu_custom_call.1} parent=31 // pred_check
          %p235 = pneg %p89
        $region38: #{tpu_custom_call.1} parent=31 // pred_check_branch
          %237 = sbr.rel (%p235) target = $region40
        $region39: #{tpu_custom_call.1} parent=31 // pred_region
          %238 = dma.done %s231, 512
        $region40: #{tpu_custom_call.1} parent=31 // pred_fallthru
          _
        %s239 = sand.u32 %s21, 1
        %s240 = scalar_lea.sflag [#allocation6], %s239
        %s241 = sand.u32 %s104, 1
        %s242 = scalar_lea.vmem [#allocation7], %s241
        // Predicated region
        $region41: #{tpu_custom_call.1} parent=31 // pred_check
          %p243 = pneg %p117
        $region42: #{tpu_custom_call.1} parent=31 // pred_check_branch
          %245 = sbr.rel (%p243) target = $region44
        $region43: #{tpu_custom_call.1} parent=31 // pred_region
          %246 = dma.done %s240, 16
        $region44: #{tpu_custom_call.1} parent=31 // pred_fallthru
          _
        %p247 = pneg %p61
        %p248 = pneg %p58
        %s249 = sand.u32 %s21, 1
        %s250 = scalar_lea.sflag [#allocation6], %s249
        %s251 = sand.u32 %s76, 1
        %s252 = smul.addr %s251, 32
        %s253 = scalar_lea.vmem [#allocation5], %s252
        %p254 = pneg %p89
        %p255 = pneg %p86
        %s256 = sand.u32 %s21, 1
        %s257 = scalar_lea.sflag [#allocation6], %s256
        %s258 = sand.u32 %s104, 1
        %s259 = scalar_lea.vmem [#allocation7], %s258
        %p260 = pneg %p117
        %p261 = pneg %p114
        %p262 = pneg %p147
        %p263 = pneg %p144
        %s264 = sand.u32 %s134, 1
        %s265 = scalar_lea.sflag [#allocation4], %s264
        %s266 = sand.u32 %s134, 1
        %s267 = smul.addr %s266, 8
        %s268 = scalar_lea.vmem [#allocation8], %s267
        %v269 = vld [vmem:[#allocation2] sm:$0xff]
        %v270 = vld [vmem:[%s234] sm:$0xff]
        %v271 = vld [vmem:[%s234 + $0x8] sm:$0xff]
        %v272 = vld [vmem:[%s234 + $0x10] sm:$0xff]
        %v273 = vld [vmem:[%s234 + $0x18] sm:$0xff]
        %v274 = vld [vmem:[%s242] sm:$0x1]
        %v276 = vlaneseq
        %v277 = vshrl.u32 %v276, 7
        %v278 = vsub.s32 0, %v277
        %v279 = vrot.slane %v274, %v278
        %vm281 = vcmask 261120
        %v283 = vsel %vm281, %v269, 0
        %285 = vmatprep.subr.mxu0 0.0
        %286 = vmatpush1.msra.mxu0 0.0
        %287 = vmatprep.subr.mxu0 0.0
        %288 = vmatpush1.msra.mxu0 0.0
        %289 = vmatprep.subr.mxu0 0.0
        %290 = vmatpush1.msra.mxu0 0.0
        %291 = vmatprep.subr.mxu0 0.0
        %292 = vmatpush1.msra.mxu0 0.0
        %293 = vmatprep.subr.mxu0 0.0
        %294 = vmatpush1.msra.mxu0 0.0
        %295 = vmatprep.subr.mxu0 0.0
        %296 = vmatpush1.msra.mxu0 0.0
        %297 = vmatprep.subr.mxu0 0.0
        %298 = vmatpush1.msra.mxu0 0.0
        %299 = vmatprep.subr.mxu0 0.0
        %300 = vmatpush1.msra.mxu0 0.0
        %301 = vmatprep.subr.mxu0 0.0
        %302 = vmatpush1.msra.mxu0 0.0
        %303 = vmatprep.subr.mxu0 0.0
        %304 = vmatpush1.msra.mxu0 0.0
        %305 = vmatprep.subr.mxu0 0.0
        %306 = vmatpush1.msra.mxu0 0.0
        %307 = vmatprep.subr.mxu0 0.0
        %308 = vmatpush1.msra.mxu0 0.0
        %309 = vmatprep.subr.mxu0 0.0
        %310 = vmatpush1.msra.mxu0 %v273
        %311 = vmatprep.subr.mxu0 0.0
        %312 = vmatpush1.msra.mxu0 %v272
        %313 = vmatprep.subr.mxu0 0.0
        %314 = vmatpush1.msra.mxu0 %v271
        %315 = vmatprep.subr.mxu0 0.0
        %316 = vmatpush1.msra.mxu0 %v270
        %317 = vmatprep.subr.mxu0 0.0
        %318 = vmatpush2.msra.mxu0 0.0
        %319 = vmatprep.subr.mxu0 0.0
        %320 = vmatpush2.msra.mxu0 0.0
        %321 = vmatprep.subr.mxu0 0.0
        %322 = vmatpush2.msra.mxu0 0.0
        %323 = vmatprep.subr.mxu0 0.0
        %324 = vmatpush2.msra.mxu0 0.0
        %325 = vmatprep.subr.mxu0 0.0
        %326 = vmatpush2.msra.mxu0 0.0
        %327 = vmatprep.subr.mxu0 0.0
        %328 = vmatpush2.msra.mxu0 0.0
        %329 = vmatprep.subr.mxu0 0.0
        %330 = vmatpush2.msra.mxu0 0.0
        %331 = vmatprep.subr.mxu0 0.0
        %332 = vmatpush2.msra.mxu0 0.0
        %333 = vmatprep.subr.mxu0 0.0
        %334 = vmatpush2.msra.mxu0 0.0
        %335 = vmatprep.subr.mxu0 0.0
        %336 = vmatpush2.msra.mxu0 0.0
        %337 = vmatprep.subr.mxu0 0.0
        %338 = vmatpush2.msra.mxu0 0.0
        %339 = vmatprep.subr.mxu0 0.0
        %340 = vmatpush2.msra.mxu0 0.0
        %341 = vmatprep.subr.mxu0 0.0
        %342 = vmatpush2.msra.mxu0 0.0
        %343 = vmatprep.subr.mxu0 0.0
        %344 = vmatpush2.msra.mxu0 0.0
        %345 = vmatprep.subr.mxu0 0.0
        %346 = vmatpush2.msra.mxu0 0.0
        %347 = vmatprep.subr.mxu0 0.0
        %348 = vmatpush2.msra.mxu0 0.0
        %349 = vmatprep.mubr.f32.mxu0 0.0
        %350 = vmatmul.mubr.f32.gmra.mxu0 %v283
        %v351 = vpop.f32.mrf.mxu0
        %v352 = vadd.f32 %v279, %v351
        %v353 = vpop.f32.mrf.mxu0
        %354 = vdwg.mxu0
        %355 = vst [vmem:[%s268] sm:$0xff] %v352
        %s356 = sand.u32 %s134, 1
        %s357 = scalar_lea.sflag [#allocation4], %s356
        %s358 = sand.u32 %s134, 1
        %s359 = smul.addr %s358, 8
        %s360 = scalar_lea.vmem [#allocation8], %s359
        // Predicated region
        $region45: #{tpu_custom_call.1} parent=31 // pred_check
          %p361 = pneg %p144
        $region46: #{tpu_custom_call.1} parent=31 // pred_check_branch
          %363 = sbr.rel (%p361) target = $region48
        $region47: #{tpu_custom_call.1} parent=31 // pred_region
          %s365 = ssub.s32 128, 128
          %366 = vsyncadd %s357, %s365
          %s367 = sadd.s32 %s27, %s28
          %s368 = sadd.s32 %s367, %s26
          %s369 = smul.addr %s368, 128
          %s370 = scalar_lea.hbm %s3, %s369
          %s372 = sshll.u32 %s360, 4
          %s373 = int_to_ptr.vmem [resolvable:$true] %s372
          %375 = dma.vmem_to_hbm [thread:$0]  %s373, 128, %s370, %s357
        $region48: #{tpu_custom_call.1} parent=31 // pred_fallthru
          _
      $region32: #{tpu_custom_call.1} parent=5 // pred_fallthru
        _
      %p376 = scmp.le.s32.totalorder 2, %s16
      // Predicated region
      $region49: #{tpu_custom_call.1} parent=5 // pred_check
        %p377 = pneg %p376
      $region50: #{tpu_custom_call.1} parent=5 // pred_check_branch
        %379 = sbr.rel (%p377) target = $region52
      $region51: #{tpu_custom_call.1} parent=5 // pred_region
        %s380 = ssub.s32 %s16, 2
        // Predicated region
        $region53: #{tpu_custom_call.1} parent=51 // pred_check
          %p381 = pneg %p150
        $region54: #{tpu_custom_call.1} parent=51 // pred_check_branch
          %383 = sbr.rel (%p381) target = $region56
        $region55: #{tpu_custom_call.1} parent=51 // pred_region
          %s384 = sand.u32 %s135, 1
          %s385 = scalar_lea.sflag [#allocation4], %s384
          %s386 = sand.u32 %s135, 1
          %s387 = smul.addr %s386, 8
          %s388 = scalar_lea.vmem [#allocation8], %s387
          %389 = dma.done %s385, 128
        $region56: #{tpu_custom_call.1} parent=51 // pred_fallthru
          _
      $region52: #{tpu_custom_call.1} parent=5 // pred_fallthru
        _
    $region6: #{tpu_custom_call.1} parent=1 // loop_footer
      %s20 = sadd.s32 1, %s16
    $region7: #{tpu_custom_call.1} parent=1 // loop_footer_branch
      %15 = sbr.rel target = $region3
    $region8: #{tpu_custom_call.1} parent=1 // loop_exit
      _
    %390 = vsyncpa [#allocation3], 1
    %s391 = scalar_lea.sflag [#allocation3], 1
    %392 = vsyncpa %s391, 1
    %393 = vsyncpa [#allocation6], 1
    %s394 = scalar_lea.sflag [#allocation6], 1
    %395 = vsyncpa %s394, 1
    %396 = vsyncpa [#allocation4], 1
    %s397 = scalar_lea.sflag [#allocation4], 1
    %398 = vsyncpa %s397, 1

</llo_original>
